<compile_context>
chip_gen: v7x
topology: tpu7x:2x2x1
jax: 0.10.0
libtpu: 0.0.40
codegen_flags: <defaults>
</compile_context>

<pallas_src>
import functools

import jax
import jax.numpy as jnp
from jax.experimental import pallas as pl
from jax.experimental.pallas import tpu as pltpu


def _round_up(x, m):
    return (x + m - 1) // m * m


def _contrastive_kernel(img_ref, cap_ref, inv_img_ref, inv_cap_ref,
                        pos_col_ref, pos_row_ref,
                        row_out_ref, colp_out_ref, acc_ref, *,
                        margin, max_violation, batch, tm, tn):
    """One (i, j, k) grid step.

    img_ref:  (TM, TK) image rows of block i          (input dtype)
    cap_ref:  (TN, TK) caption rows of block j        (input dtype)
    inv_img_ref / pos_col_ref: (TM, 1) f32 per-row 1/norm and positive diag
    inv_cap_ref / pos_row_ref: (1, TN) f32 per-col 1/norm and positive diag
    row_out_ref:  (TM, 1) f32 per-row max/sum of img2cap hinge (acc over j,k)
    colp_out_ref: (8, TN) f32 per-(row-block, col) partial of cap2img hinge
    acc_ref:      (TM, TN) f32 raw matmul accumulator (over k)
    """
    i = pl.program_id(0)
    j = pl.program_id(1)
    k = pl.program_id(2)

    @pl.when(k == 0)
    def _():
        acc_ref[...] = jnp.zeros_like(acc_ref)

    # Raw (un-normalized) block matmul on the MXU: bf16 operands, f32
    # accumulation.  Contracting the last dim of both operands is the same
    # q·k^T pattern flash-attention uses.
    # TODO(synk): inspect the bundle dump for a vxpose here; if one is emitted,
    # feed captions pre-transposed as (E, B) from the wrapper instead.
    acc_ref[...] += jax.lax.dot_general(
        img_ref[...].astype(jnp.bfloat16),
        cap_ref[...].astype(jnp.bfloat16),
        (((1,), (1,)), ((), ())),
        preferred_element_type=jnp.float32)

    @pl.when(k == pl.num_programs(2) - 1)
    def _():
        # Normalize AFTER the matmul via the (TM,1) x (1,TN) broadcast product.
        sim = acc_ref[...] * inv_img_ref[...] * inv_cap_ref[...]     # f32

        row_ids = i * tm + jax.lax.broadcasted_iota(jnp.int32, (tm, tn), 0)
        col_ids = j * tn + jax.lax.broadcasted_iota(jnp.int32, (tm, tn), 1)
        valid = (row_ids < batch) & (col_ids < batch) & (row_ids != col_ids)
        # Single fused mask: invalid / diagonal entries -> very negative so the
        # hinge below is exactly 0 for them (matches masked_fill_(eye, 0)).
        sim = jnp.where(valid, sim, -1e30)

        # img2cap hinge uses the column positive pos[j]; cap2img uses pos[i].
        i2c = jnp.maximum(margin + sim - pos_row_ref[...], 0.0)      # (TM, TN)
        c2i = jnp.maximum(margin + sim - pos_col_ref[...], 0.0)      # (TM, TN)

        if max_violation:
            r_part = jnp.max(i2c, axis=1, keepdims=True)             # (TM, 1)
            c_part = jnp.max(c2i, axis=0, keepdims=True)             # (1, TN)
        else:
            r_part = jnp.sum(i2c, axis=1, keepdims=True)
            c_part = jnp.sum(c2i, axis=0, keepdims=True)

        # Per-row accumulator: (TM,1) output block is resident across (j, k).
        @pl.when(j == 0)
        def _():
            row_out_ref[...] = jnp.zeros_like(row_out_ref)
        if max_violation:
            row_out_ref[...] = jnp.maximum(row_out_ref[...], r_part)
        else:
            row_out_ref[...] += r_part

        # Per-(row-block, column) partial: written exactly once per (i, j), so
        # nothing is shared across the i axis and it can run core-parallel.
        colp_out_ref[...] = jnp.broadcast_to(c_part, colp_out_ref.shape)


def contrastive_loss(images, captions, *, margin=0.2, max_violation=True):
    """images, captions: (B, E) float arrays. Returns the scalar loss."""
    B, E = images.shape
    assert captions.shape == (B, E)

    # ---- cheap XLA prologue: per-row scalars only (no normalized slabs). ----
    imgs32 = images.astype(jnp.float32)
    caps32 = captions.astype(jnp.float32)
    inv_img = 1.0 / (jnp.sqrt(jnp.sum(imgs32 * imgs32, axis=1, keepdims=True)) + 1e-6)
    inv_cap = 1.0 / (jnp.sqrt(jnp.sum(caps32 * caps32, axis=1, keepdims=True)) + 1e-6)
    pos = jnp.sum(imgs32 * caps32, axis=1, keepdims=True) * inv_img * inv_cap  # (B,1)

    # ---- tile sizes: 256-aligned row/col blocks (v6e/v7x MXU), K chunk <=512.
    bp0 = _round_up(max(B, 8), 8)
    if bp0 <= 256:
        tm = bp = bp0                               # single row/col block
    else:
        tm = 256
        bp = _round_up(B, 256)
    tn = tm
    if E <= 512:
        ep = tk = E                                 # full-K block (== array dim)
    else:
        ep = _round_up(E, 128)
        tk = next(t for t in (512, 384, 256, 128) if ep % t == 0)
    n_i, n_j, n_k = bp // tm, bp // tn, ep // tk

    # ---- pad only when needed (skip the HBM round trip for aligned inputs),
    # and keep the incoming dtype (no forced f32 upcast of the big slabs). ----
    if bp != B or ep != E:
        img_in = jnp.zeros((bp, ep), images.dtype).at[:B, :E].set(images)
        cap_in = jnp.zeros((bp, ep), captions.dtype).at[:B, :E].set(captions)
    else:
        img_in, cap_in = images, captions

    inv_img_p = jnp.zeros((bp, 1), jnp.float32).at[:B].set(inv_img)
    pos_col_p = jnp.zeros((bp, 1), jnp.float32).at[:B].set(pos)
    inv_cap_p = jnp.zeros((1, bp), jnp.float32).at[:, :B].set(inv_cap.T)
    pos_row_p = jnp.zeros((1, bp), jnp.float32).at[:, :B].set(pos.T)

    kernel = functools.partial(
        _contrastive_kernel, margin=float(margin),
        max_violation=bool(max_violation), batch=int(B), tm=tm, tn=tn)

    row_out, colp_out = pl.pallas_call(
        kernel,
        out_shape=(jax.ShapeDtypeStruct((bp, 1), jnp.float32),
                   jax.ShapeDtypeStruct((8 * n_i, bp), jnp.float32)),
        grid_spec=pltpu.PrefetchScalarGridSpec(
            num_scalar_prefetch=0,
            grid=(n_i, n_j, n_k),
            in_specs=[
                pl.BlockSpec((tm, tk), lambda i, j, k: (i, k)),   # image rows
                pl.BlockSpec((tn, tk), lambda i, j, k: (j, k)),   # caption rows
                pl.BlockSpec((tm, 1), lambda i, j, k: (i, 0)),    # inv_img
                pl.BlockSpec((1, tn), lambda i, j, k: (0, j)),    # inv_cap
                pl.BlockSpec((tm, 1), lambda i, j, k: (i, 0)),    # pos (col layout)
                pl.BlockSpec((1, tn), lambda i, j, k: (0, j)),    # pos (row layout)
            ],
            out_specs=[
                pl.BlockSpec((tm, 1), lambda i, j, k: (i, 0)),    # per-row acc
                pl.BlockSpec((8, tn), lambda i, j, k: (i, j)),    # per-col partials
            ],
            scratch_shapes=[pltpu.VMEM((tm, tn), jnp.float32)]),
        compiler_params=pltpu.CompilerParams(
            # Row-block axis is independent per block -> megacore-parallel on
            # v7x; j (row accumulation) and k (matmul accumulation) sequential.
            dimension_semantics=("parallel", "arbitrary", "arbitrary")),
    )(img_in, cap_in, inv_img_p, inv_cap_p, pos_col_p, pos_row_p)

    # ---- tiny O(B) final reduction in XLA (lengths B and n_i*B). ----
    row = row_out[:B, 0]                                     # (B,)
    col_parts = colp_out.reshape(n_i, 8, bp)[:, 0, :B]       # (n_i, B)
    if max_violation:
        col = jnp.max(col_parts, axis=0)
        return jnp.mean(row) + jnp.mean(col)
    col = jnp.sum(col_parts, axis=0)
    return (jnp.sum(row) + jnp.sum(col)) / float(B * B)


def contrastive_loss_ref(images, captions, margin, max_violation):
    """Pure-JAX reference mirroring the PyTorch module."""
    inorm = jnp.sqrt(jnp.sum(images * images, axis=1, keepdims=True)) + 1e-6
    cnorm = jnp.sqrt(jnp.sum(captions * captions, axis=1, keepdims=True)) + 1e-6
    sim = jnp.matmul(images / inorm, (captions / cnorm).T,
                     precision=jax.lax.Precision.HIGHEST)
    pos = jnp.diagonal(sim)[:, None]
    c2i = jnp.maximum(margin + sim - pos, 0.0)
    i2c = jnp.maximum(margin + sim - pos.T, 0.0)
    eye = jnp.eye(sim.shape[0], dtype=bool)
    c2i = jnp.where(eye, 0.0, c2i)
    i2c = jnp.where(eye, 0.0, i2c)
    if max_violation:
        i2c = jnp.max(i2c, axis=1)
        c2i = jnp.max(c2i, axis=0)
    return jnp.mean(i2c) + jnp.mean(c2i)


if __name__ == "__main__":
    key = jax.random.PRNGKey(0)

    cases = [
        # toy shapes, both loss modes (single-block 1x1x1 grid)
        dict(B=4,   E=32,  margin=0.2, max_violation=True,  dtype=jnp.float32,  tol=1e-2),
        dict(B=4,   E=32,  margin=0.2, max_violation=False, dtype=jnp.float32,  tol=1e-2),
        # unaligned shape -> padded rows + 2x2 row/col grid (masking exercised)
        dict(B=300, E=200, margin=0.2, max_violation=True,  dtype=jnp.float32,  tol=1e-2),
        # aligned bf16 inputs -> no-pad fast path, bf16 DMA + bf16 MXU operands
        dict(B=512, E=256, margin=0.1, max_violation=False, dtype=jnp.bfloat16, tol=2e-2),
    ]

    for idx, c in enumerate(cases):
        k1, k2 = jax.random.split(jax.random.fold_in(key, idx))
        imgs = jax.random.normal(k1, (c["B"], c["E"]), jnp.float32).astype(c["dtype"])
        caps = jax.random.normal(k2, (c["B"], c["E"]), jnp.float32).astype(c["dtype"])

        out = jax.block_until_ready(
            contrastive_loss(imgs, caps, margin=c["margin"],
                             max_violation=c["max_violation"]))
        ref = contrastive_loss_ref(imgs.astype(jnp.float32),
                                   caps.astype(jnp.float32),
                                   c["margin"], c["max_violation"])
        assert bool(jnp.isfinite(out)), c
        assert abs(float(out) - float(ref)) < c["tol"], (c, float(out), float(ref))

    print("KERNEL_OK")
</pallas_src>

<mosaic_0001>
module attributes {stable_mosaic.version = 11 : i64} {
  func.func @_contrastive_kernel(%arg0: i32, %arg1: i32, %arg2: i32, %arg3: memref<8x32xf32, #tpu.memory_space<vmem>>, %arg4: memref<8x32xf32, #tpu.memory_space<vmem>>, %arg5: memref<8x1xf32, #tpu.memory_space<vmem>>, %arg6: memref<1x8xf32, #tpu.memory_space<vmem>>, %arg7: memref<8x1xf32, #tpu.memory_space<vmem>>, %arg8: memref<1x8xf32, #tpu.memory_space<vmem>>, %arg9: memref<8x1xf32, #tpu.memory_space<vmem>>, %arg10: memref<8x8xf32, #tpu.memory_space<vmem>>, %arg11: memref<8x8xf32, #tpu.memory_space<vmem>>) attributes {dimension_semantics = [#tpu.dimension_semantics<parallel>, #tpu.dimension_semantics<arbitrary>, #tpu.dimension_semantics<arbitrary>], iteration_bounds = array<i64: 1, 1, 1>, scalar_prefetch = 0 : i64, scratch_operands = 1 : i64, tpu.core_type = #tpu.core_type<tc>, window_params = [{transform_indices = @transform_0, window_bounds = array<i64: 8, 32>}, {transform_indices = @transform_1, window_bounds = array<i64: 8, 32>}, {transform_indices = @transform_2, window_bounds = array<i64: 8, 1>}, {transform_indices = @transform_3, window_bounds = array<i64: 1, 8>}, {transform_indices = @transform_4, window_bounds = array<i64: 8, 1>}, {transform_indices = @transform_5, window_bounds = array<i64: 1, 8>}, {transform_indices = @transform_6, window_bounds = array<i64: 8, 1>}, {transform_indices = @transform_7, window_bounds = array<i64: 8, 8>}]} {
    %c0_i32 = arith.constant 0 : i32
    %0 = arith.cmpi eq, %arg2, %c0_i32 : i32
    %1 = arith.extui %0 : i1 to i32
    %c0_i32_0 = arith.constant 0 : i32
    %2 = arith.cmpi ne, %1, %c0_i32_0 : i32
    scf.if %2 {
      %cst_10 = arith.constant 0.000000e+00 : f32
      %14 = vector.broadcast %cst_10 : f32 to vector<8x8xf32>
      %c0_11 = arith.constant 0 : index
      %c0_12 = arith.constant 0 : index
      %15 = vector.load %arg11[%c0_11, %c0_12] : memref<8x8xf32, #tpu.memory_space<vmem>>, vector<8x8xf32>
      tpu.vector_store %arg11[%c0_11, %c0_12], %14 {strides = array<i32>} : memref<8x8xf32, #tpu.memory_space<vmem>>, vector<8x8xf32>,
    } else {
    }
    %c0 = arith.constant 0 : index
    %c0_1 = arith.constant 0 : index
    %3 = vector.load %arg11[%c0, %c0_1] : memref<8x8xf32, #tpu.memory_space<vmem>>, vector<8x8xf32>
    %c0_2 = arith.constant 0 : index
    %c0_3 = arith.constant 0 : index
    %4 = vector.load %arg3[%c0_2, %c0_3] : memref<8x32xf32, #tpu.memory_space<vmem>>, vector<8x32xf32>
    %5 = arith.truncf %4 : vector<8x32xf32> to vector<8x32xbf16>
    %c0_4 = arith.constant 0 : index
    %c0_5 = arith.constant 0 : index
    %6 = vector.load %arg4[%c0_4, %c0_5] : memref<8x32xf32, #tpu.memory_space<vmem>>, vector<8x32xf32>
    %7 = arith.truncf %6 : vector<8x32xf32> to vector<8x32xbf16>
    %cst = arith.constant dense<0.000000e+00> : vector<8x8xf32>
    %8 = tpu.matmul %5, %7, %cst {dimension_numbers = #tpu.dot_dimension_numbers<[1], [1], [0], [0], [0, 0, 1, 0], [], []>} : vector<8x32xbf16>, vector<8x32xbf16>, vector<8x8xf32> -> vector<8x8xf32>
    %9 = arith.addf %3, %8 : vector<8x8xf32>
    %c0_6 = arith.constant 0 : index
    %c0_7 = arith.constant 0 : index
    %10 = vector.load %arg11[%c0_6, %c0_7] : memref<8x8xf32, #tpu.memory_space<vmem>>, vector<8x8xf32>
    tpu.vector_store %arg11[%c0_6, %c0_7], %9 {strides = array<i32>} : memref<8x8xf32, #tpu.memory_space<vmem>>, vector<8x8xf32>,
    %c0_i32_8 = arith.constant 0 : i32
    %11 = arith.cmpi eq, %arg2, %c0_i32_8 : i32
    %12 = arith.extui %11 : i1 to i32
    %c0_i32_9 = arith.constant 0 : i32
    %13 = arith.cmpi ne, %12, %c0_i32_9 : i32
    scf.if %13 {
      %c0_10 = arith.constant 0 : index
      %c0_11 = arith.constant 0 : index
      %14 = vector.load %arg11[%c0_10, %c0_11] : memref<8x8xf32, #tpu.memory_space<vmem>>, vector<8x8xf32>
      %c0_12 = arith.constant 0 : index
      %c0_13 = arith.constant 0 : index
      %15 = vector.load %arg5[%c0_12, %c0_13] : memref<8x1xf32, #tpu.memory_space<vmem>>, vector<8x1xf32>
      %16 = vector.broadcast %15 : vector<8x1xf32> to vector<8x8xf32>
      %17 = arith.mulf %14, %16 : vector<8x8xf32>
      %c0_14 = arith.constant 0 : index
      %c0_15 = arith.constant 0 : index
      %18 = vector.load %arg6[%c0_14, %c0_15] : memref<1x8xf32, #tpu.memory_space<vmem>>, vector<1x8xf32>
      %19 = vector.broadcast %18 : vector<1x8xf32> to vector<8x8xf32>
      %20 = arith.mulf %17, %19 : vector<8x8xf32>
      %c8_i32 = arith.constant 8 : i32
      %21 = arith.muli %arg0, %c8_i32 : i32
      %22 = tpu.iota {dimensions = array<i32: 0>} : vector<8x8xi32>
      %23 = vector.broadcast %21 : i32 to vector<8x8xi32>
      %24 = arith.addi %23, %22 : vector<8x8xi32>
      %c8_i32_16 = arith.constant 8 : i32
      %25 = arith.muli %arg1, %c8_i32_16 : i32
      %26 = tpu.iota {dimensions = array<i32: 1>} : vector<8x8xi32>
      %27 = vector.broadcast %25 : i32 to vector<8x8xi32>
      %28 = arith.addi %27, %26 : vector<8x8xi32>
      %c4_i32 = arith.constant 4 : i32
      %29 = vector.broadcast %c4_i32 : i32 to vector<8x8xi32>
      %30 = arith.cmpi slt, %24, %29 : vector<8x8xi32>
      %c4_i32_17 = arith.constant 4 : i32
      %31 = vector.broadcast %c4_i32_17 : i32 to vector<8x8xi32>
      %32 = arith.cmpi slt, %28, %31 : vector<8x8xi32>
      %33 = arith.andi %30, %32 : vector<8x8xi1>
      %34 = arith.cmpi ne, %24, %28 : vector<8x8xi32>
      %35 = arith.andi %33, %34 : vector<8x8xi1>
      %cst_18 = arith.constant -1.000000e+30 : f32
      %36 = vector.broadcast %cst_18 : f32 to vector<8x8xf32>
      %37 = arith.select %35, %20, %36 : vector<8x8xi1>, vector<8x8xf32>
      %cst_19 = arith.constant 2.000000e-01 : f32
      %38 = vector.broadcast %cst_19 : f32 to vector<8x8xf32>
      %39 = arith.addf %38, %37 : vector<8x8xf32>
      %c0_20 = arith.constant 0 : index
      %c0_21 = arith.constant 0 : index
      %40 = vector.load %arg8[%c0_20, %c0_21] : memref<1x8xf32, #tpu.memory_space<vmem>>, vector<1x8xf32>
      %41 = vector.broadcast %40 : vector<1x8xf32> to vector<8x8xf32>
      %42 = arith.subf %39, %41 : vector<8x8xf32>
      %cst_22 = arith.constant 0.000000e+00 : f32
      %43 = vector.broadcast %cst_22 : f32 to vector<8x8xf32>
      %44 = arith.maximumf %42, %43 : vector<8x8xf32>
      %cst_23 = arith.constant 2.000000e-01 : f32
      %45 = vector.broadcast %cst_23 : f32 to vector<8x8xf32>
      %46 = arith.addf %45, %37 : vector<8x8xf32>
      %c0_24 = arith.constant 0 : index
      %c0_25 = arith.constant 0 : index
      %47 = vector.load %arg7[%c0_24, %c0_25] : memref<8x1xf32, #tpu.memory_space<vmem>>, vector<8x1xf32>
      %48 = vector.broadcast %47 : vector<8x1xf32> to vector<8x8xf32>
      %49 = arith.subf %46, %48 : vector<8x8xf32>
      %cst_26 = arith.constant 0.000000e+00 : f32
      %50 = vector.broadcast %cst_26 : f32 to vector<8x8xf32>
      %51 = arith.maximumf %49, %50 : vector<8x8xf32>
      %cst_27 = arith.constant dense<0xFF800000> : vector<8xf32>
      %52 = vector.multi_reduction <maximumf>, %44, %cst_27 [1] : vector<8x8xf32> to vector<8xf32>
      %53 = vector.shape_cast %52 : vector<8xf32> to vector<8x1xf32>
      %cst_28 = arith.constant dense<0xFF800000> : vector<8xf32>
      %54 = vector.multi_reduction <maximumf>, %51, %cst_28 [0] : vector<8x8xf32> to vector<8xf32>
      %55 = vector.shape_cast %54 : vector<8xf32> to vector<1x8xf32>
      %c0_i32_29 = arith.constant 0 : i32
      %56 = arith.cmpi eq, %arg1, %c0_i32_29 : i32
      %57 = arith.extui %56 : i1 to i32
      %c0_i32_30 = arith.constant 0 : i32
      %58 = arith.cmpi ne, %57, %c0_i32_30 : i32
      scf.if %58 {
        %cst_37 = arith.constant 0.000000e+00 : f32
        %65 = vector.broadcast %cst_37 : f32 to vector<8x1xf32>
        %c0_38 = arith.constant 0 : index
        %c0_39 = arith.constant 0 : index
        %66 = vector.load %arg9[%c0_38, %c0_39] : memref<8x1xf32, #tpu.memory_space<vmem>>, vector<8x1xf32>
        tpu.vector_store %arg9[%c0_38, %c0_39], %65 {strides = array<i32>} : memref<8x1xf32, #tpu.memory_space<vmem>>, vector<8x1xf32>,
      } else {
      }
      %c0_31 = arith.constant 0 : index
      %c0_32 = arith.constant 0 : index
      %59 = vector.load %arg9[%c0_31, %c0_32] : memref<8x1xf32, #tpu.memory_space<vmem>>, vector<8x1xf32>
      %60 = arith.maximumf %59, %53 : vector<8x1xf32>
      %c0_33 = arith.constant 0 : index
      %c0_34 = arith.constant 0 : index
      %61 = vector.load %arg9[%c0_33, %c0_34] : memref<8x1xf32, #tpu.memory_space<vmem>>, vector<8x1xf32>
      tpu.vector_store %arg9[%c0_33, %c0_34], %60 {strides = array<i32>} : memref<8x1xf32, #tpu.memory_space<vmem>>, vector<8x1xf32>,
      %62 = vector.shape_cast %55 : vector<1x8xf32> to vector<1x8xf32>
      %63 = vector.broadcast %62 : vector<1x8xf32> to vector<8x8xf32>
      %c0_35 = arith.constant 0 : index
      %c0_36 = arith.constant 0 : index
      %64 = vector.load %arg10[%c0_35, %c0_36] : memref<8x8xf32, #tpu.memory_space<vmem>>, vector<8x8xf32>
      tpu.vector_store %arg10[%c0_35, %c0_36], %63 {strides = array<i32>} : memref<8x8xf32, #tpu.memory_space<vmem>>, vector<8x8xf32>,
    } else {
    }
    return
  }
  func.func @transform_0(%arg0: i32, %arg1: i32, %arg2: i32) -> (i32, i32) {
    %c0_i32 = arith.constant 0 : i32
    return %arg0, %arg2 : i32, i32
  }
  func.func @transform_1(%arg0: i32, %arg1: i32, %arg2: i32) -> (i32, i32) {
    %c0_i32 = arith.constant 0 : i32
    return %arg1, %arg2 : i32, i32
  }
  func.func @transform_2(%arg0: i32, %arg1: i32, %arg2: i32) -> (i32, i32) {
    %c0_i32 = arith.constant 0 : i32
    %c0_i32_0 = arith.constant 0 : i32
    return %arg0, %c0_i32 : i32, i32
  }
  func.func @transform_3(%arg0: i32, %arg1: i32, %arg2: i32) -> (i32, i32) {
    %c0_i32 = arith.constant 0 : i32
    %c0_i32_0 = arith.constant 0 : i32
    return %c0_i32, %arg1 : i32, i32
  }
  func.func @transform_4(%arg0: i32, %arg1: i32, %arg2: i32) -> (i32, i32) {
    %c0_i32 = arith.constant 0 : i32
    %c0_i32_0 = arith.constant 0 : i32
    return %arg0, %c0_i32 : i32, i32
  }
  func.func @transform_5(%arg0: i32, %arg1: i32, %arg2: i32) -> (i32, i32) {
    %c0_i32 = arith.constant 0 : i32
    %c0_i32_0 = arith.constant 0 : i32
    return %c0_i32, %arg1 : i32, i32
  }
  func.func @transform_6(%arg0: i32, %arg1: i32, %arg2: i32) -> (i32, i32) {
    %c0_i32 = arith.constant 0 : i32
    %c0_i32_0 = arith.constant 0 : i32
    return %arg0, %c0_i32 : i32, i32
  }
  func.func @transform_7(%arg0: i32, %arg1: i32, %arg2: i32) -> (i32, i32) {
    %c0_i32 = arith.constant 0 : i32
    return %arg0, %arg1 : i32, i32
  }
}

</mosaic_0001>

<llo_original>
// kernel: tpu_custom_call.1
$region0: #{tpu_custom_call.1}
  #allocation0 [shape = 'u32[]', space=smem, size = 0x4, offset = 0x4, fixed_abs, tag = 'smem constant byte address 0x4 - core index']
  #allocation1 [shape = 'u32[144,128]{1,0:T(1,128)}', space=vmem, size = 0x12000, scoped, tag = 'internal scratch']
  #allocation2 [shape = 'f32[8,8]{1,0:T(8,128)}', space=vmem, size = 0x1000, scoped, tag = 'scratch operand']
  %s0 = inlined_call_operand.vmem [shape: f32[8,32], index: 0, kind: input, shape index: {}]
  %s1 = inlined_call_operand.vmem [shape: f32[8,32], index: 1, kind: input, shape index: {}]
  %s2 = inlined_call_operand.vmem [shape: f32[8,1], index: 2, kind: input, shape index: {}]
  %s3 = inlined_call_operand.vmem [shape: f32[1,8], index: 3, kind: input, shape index: {}]
  %s4 = inlined_call_operand.vmem [shape: f32[8,1], index: 4, kind: input, shape index: {}]
  %s5 = inlined_call_operand.vmem [shape: f32[1,8], index: 5, kind: input, shape index: {}]
  %s6 = inlined_call_operand.vmem [shape: f32[8,1], index: 6, kind: output, shape index: {0}]
  %s7 = inlined_call_operand.hbm [shape: f32[8,8], index: 7, kind: output, shape index: {1}]
  %8 = xla_tuple %s6, %s7
  %s9 = sld [smem:[#allocation0]]
  $region54: #{tpu_custom_call.1} parent=0
    _
  %s11 = ssub.s32 1, %s9
  %s12 = scalar_select 0, %s11, %s9
  $region1: #{tpu_custom_call.1} parent=0
    #allocation3 [shape = 'u8[4096]{0}', space=vmem, size = 0x1000, scoped, tag = 'output window, operand 1, single buffered']
    #allocation4 [shape = 's32[1]{0}', space=sflag, size = 0x4, scoped, tag = 'scoped memory for tpu_custom_call.1']
    %13 = vsyncpa [#allocation4], 0
    // Predicated region
    $region2: #{tpu_custom_call.1} parent=1 // pred_check
      _
    $region3: #{tpu_custom_call.1} parent=1 // pred_check_branch
      %15 = sbr.rel (0) target = $region5
    $region4: #{tpu_custom_call.1} parent=1 // pred_region
      _
    $region5: #{tpu_custom_call.1} parent=1 // pred_fallthru
      _
    // Predicated region
    $region6: #{tpu_custom_call.1} parent=1 // pred_check
      _
    $region7: #{tpu_custom_call.1} parent=1 // pred_check_branch
      %17 = sbr.rel (0) target = $region9
    $region8: #{tpu_custom_call.1} parent=1 // pred_region
      _
    $region9: #{tpu_custom_call.1} parent=1 // pred_fallthru
      _
    // Predicated region
    $region10: #{tpu_custom_call.1} parent=1 // pred_check
      _
    $region11: #{tpu_custom_call.1} parent=1 // pred_check_branch
      %19 = sbr.rel (0) target = $region13
    $region12: #{tpu_custom_call.1} parent=1 // pred_region
      _
    $region13: #{tpu_custom_call.1} parent=1 // pred_fallthru
      _
    // Predicated region
    $region14: #{tpu_custom_call.1} parent=1 // pred_check
      _
    $region15: #{tpu_custom_call.1} parent=1 // pred_check_branch
      %21 = sbr.rel (0) target = $region17
    $region16: #{tpu_custom_call.1} parent=1 // pred_region
      _
    $region17: #{tpu_custom_call.1} parent=1 // pred_fallthru
      _
    // Predicated region
    $region18: #{tpu_custom_call.1} parent=1 // pred_check
      _
    $region19: #{tpu_custom_call.1} parent=1 // pred_check_branch
      %23 = sbr.rel (0) target = $region21
    $region20: #{tpu_custom_call.1} parent=1 // pred_region
      _
    $region21: #{tpu_custom_call.1} parent=1 // pred_fallthru
      _
    // Predicated region
    $region22: #{tpu_custom_call.1} parent=1 // pred_check
      _
    $region23: #{tpu_custom_call.1} parent=1 // pred_check_branch
      %25 = sbr.rel (0) target = $region25
    $region24: #{tpu_custom_call.1} parent=1 // pred_region
      _
    $region25: #{tpu_custom_call.1} parent=1 // pred_fallthru
      _
    %p27 = scmp.eq.s32.totalorder 0, 0
    // Predicated region
    $region26: #{tpu_custom_call.1} parent=1 // pred_check
      %p28 = pneg %p27
    $region27: #{tpu_custom_call.1} parent=1 // pred_check_branch
      %30 = sbr.rel (%p28) target = $region29
    $region28: #{tpu_custom_call.1} parent=1 // pred_region
      %vm31 = vcmask 64512
      %32 = vst.msk [vmem:[#allocation2] sm:$0xff] %vm31, 0.0
    $region29: #{tpu_custom_call.1} parent=1 // pred_fallthru
      _
    %v33 = vld [vmem:[#allocation2] sm:$0xff]
    %v34 = vld [vmem:[%s0] sm:$0xff]
    %v35 = vpack.c.bf16 %v34, %v34
    %v36 = vld [vmem:[%s1] sm:$0xff]
    %v37 = vpack.c.bf16 %v36, %v36
    %vm38 = vcmask 261120
    %v40 = vsel %vm38, %v35, 0
    %v43 = vsel %vm38, %v37, 0
    %45 = vmatprep.subr.bf16.mxu0 0
    %46 = vmatpush1.bf16.xpose.msra.mxu0 %v43
    %47 = vmatprep.subr.bf16.mxu0 0
    %48 = vmatpush1.bf16.xpose.msra.mxu0 0
    %49 = vmatprep.subr.bf16.mxu0 0
    %50 = vmatpush1.bf16.xpose.msra.mxu0 0
    %51 = vmatprep.subr.bf16.mxu0 0
    %52 = vmatpush1.bf16.xpose.msra.mxu0 0
    %53 = vmatprep.subr.bf16.mxu0 0
    %54 = vmatpush1.bf16.xpose.msra.mxu0 0
    %55 = vmatprep.subr.bf16.mxu0 0
    %56 = vmatpush1.bf16.xpose.msra.mxu0 0
    %57 = vmatprep.subr.bf16.mxu0 0
    %58 = vmatpush1.bf16.xpose.msra.mxu0 0
    %59 = vmatprep.subr.bf16.mxu0 0
    %60 = vmatpush1.bf16.xpose.msra.mxu0 0
    %61 = vmatprep.subr.bf16.mxu0 0
    %62 = vmatpush1.bf16.xpose.msra.mxu0 0
    %63 = vmatprep.subr.bf16.mxu0 0
    %64 = vmatpush1.bf16.xpose.msra.mxu0 0
    %65 = vmatprep.subr.bf16.mxu0 0
    %66 = vmatpush1.bf16.xpose.msra.mxu0 0
    %67 = vmatprep.subr.bf16.mxu0 0
    %68 = vmatpush1.bf16.xpose.msra.mxu0 0
    %69 = vmatprep.subr.bf16.mxu0 0
    %70 = vmatpush1.bf16.xpose.msra.mxu0 0
    %71 = vmatprep.subr.bf16.mxu0 0
    %72 = vmatpush1.bf16.xpose.msra.mxu0 0
    %73 = vmatprep.subr.bf16.mxu0 0
    %74 = vmatpush1.bf16.xpose.msra.mxu0 0
    %75 = vmatprep.subr.bf16.mxu0 0
    %76 = vmatpush1.bf16.xpose.msra.mxu0 0
    %77 = vmatprep.mubr.bf16.mxu0 0
    %78 = vmatmul.mubr.bf16.gmra.mrb[0].mxu0 %v40
    %v79 = vpop.f32.mrb[0].mxu0
    %v80 = vadd.f32 0.0, %v79
    %v81 = vpop.f32.mrb[0].mxu0
    %v82 = vpop.f32.mrb[0].mxu0
    %v83 = vpop.f32.mrb[0].mxu0
    %84 = vdwg.mxu0
    %v85 = vadd.f32 %v33, %v80
    %vm86 = vcmask 64512
    %87 = vst.msk [vmem:[#allocation2] sm:$0xff] %vm86, %v85
    // Predicated region
    $region30: #{tpu_custom_call.1} parent=1 // pred_check
      %p88 = pneg %p27
    $region31: #{tpu_custom_call.1} parent=1 // pred_check_branch
      %90 = sbr.rel (%p88) target = $region33
    $region32: #{tpu_custom_call.1} parent=1 // pred_region
      %v91 = vld [vmem:[#allocation2] sm:$0xff]
      %v92 = vld [vmem:[%s2] sm:$0xff]
      %94 = vset.pattern.permute.xlu0 0
      %95 = vperm.xlu0 %94, %v92
      %v96 = vpop.permute.xlu0 %95
      %v98 = vmul.f32 %v91, %v96
      %v99 = vld [vmem:[%s3] sm:$0x1]
      %v101 = vlaneseq
      %v102 = vshrl.u32 %v101, 7
      %v103 = vsub.s32 0, %v102
      %v104 = vrot.slane %v99, %v103
      %v106 = vmul.f32 %v98, %v104
      %s107 = smul.u32 0, 8
      %v108 = vlaneseq
      %v109 = vshrl.u32 %v108, 7
      %v110 = vstv %s107
      %v111 = vadd.s32 %v110, %v109
      %s112 = smul.u32 0, 8
      %v113 = vlaneseq
      %v114 = vand.u32 %v113, 127
      %v115 = vstv %s112
      %v116 = vadd.s32 %v115, %v114
      %vm117 = vcmp.lt.s32.totalorder %v111, 4
      %vm118 = vcmp.lt.s32.totalorder %v116, 4
      %vm119 = vmand %vm117, %vm118
      %vm120 = vcmp.ne.s32.totalorder %v111, %v116
      %vm121 = vmand %vm119, %vm120
      %v122 = vsel %vm121, %v106, -1e+30
      %v123 = vadd.f32 %v122, 0.2
      %v124 = vld [vmem:[%s5] sm:$0x1]
      %v126 = vlaneseq
      %v127 = vshrl.u32 %v126, 7
      %v128 = vsub.s32 0, %v127
      %v129 = vrot.slane %v124, %v128
      %v131 = vsub.f32 %v123, %v129
      %v132 = vmax.f32 %v131, 0.0
      %v133 = vld [vmem:[%s4] sm:$0xff]
      %135 = vset.pattern.permute.xlu0 0
      %136 = vperm.xlu0 %135, %v133
      %v137 = vpop.permute.xlu0 %136
      %v139 = vsub.f32 %v123, %v137
      %v140 = vmax.f32 %v139, 0.0
      %v141 = vsel %vm86, %v132, -inf
      %142 = vmax.xlane.f32.xlu0 %v141
      %v143 = vpop.xlane.xlu0 %142
      %v144 = vsel %vm86, %v140, -inf
      %v145 = vrot.slane %v144, 4
      %v146 = vmax.f32 %v144, %v145
      %v147 = vrot.slane %v146, 2
      %v148 = vmax.f32 %v146, %v147
      %v149 = vrot.slane %v148, 1
      %v150 = vmax.f32 %v148, %v149
      %p151 = scmp.eq.s32.totalorder 0, 0
      // Predicated region
      $region34: #{tpu_custom_call.1} parent=32 // pred_check
        %p152 = pneg %p151
      $region35: #{tpu_custom_call.1} parent=32 // pred_check_branch
        %154 = sbr.rel (%p152) target = $region37
      $region36: #{tpu_custom_call.1} parent=32 // pred_region
        %vm155 = vcmask 7168
        %156 = vst.msk [vmem:[%s6] sm:$0xff] %vm155, 0.0
      $region37: #{tpu_custom_call.1} parent=32 // pred_fallthru
        _
      %v157 = vld [vmem:[%s6] sm:$0xff]
      %v158 = vmax.f32 %v157, %v143
      %vm159 = vcmask 7168
      %160 = vst.msk [vmem:[%s6] sm:$0xff] %vm159, %v158
      %161 = vst.msk [vmem:[#allocation3] sm:$0xff] %vm86, %v150
    $region33: #{tpu_custom_call.1} parent=1 // pred_fallthru
      _
    // Predicated region
    $region38: #{tpu_custom_call.1} parent=1 // pred_check
      _
    $region39: #{tpu_custom_call.1} parent=1 // pred_check_branch
      %163 = sbr.rel (0) target = $region41
    $region40: #{tpu_custom_call.1} parent=1 // pred_region
      _
    $region41: #{tpu_custom_call.1} parent=1 // pred_fallthru
      _
    // Predicated region
    $region42: #{tpu_custom_call.1} parent=1 // pred_check
      _
    $region43: #{tpu_custom_call.1} parent=1 // pred_check_branch
      %165 = sbr.rel (0) target = $region45
    $region44: #{tpu_custom_call.1} parent=1 // pred_region
      %s167 = ssub.s32 128, 128
      %168 = vsyncadd [#allocation4], %s167
      %s170 = sshll.u32 [#allocation3], 4
      %s171 = int_to_ptr.vmem [resolvable:$true] %s170
      %173 = dma.vmem_to_hbm [thread:$0]  %s171, 128, %s7, [#allocation4]
    $region45: #{tpu_custom_call.1} parent=1 // pred_fallthru
      _
    // Predicated region
    $region46: #{tpu_custom_call.1} parent=1 // pred_check
      _
    $region47: #{tpu_custom_call.1} parent=1 // pred_check_branch
      %175 = sbr.rel (0) target = $region49
    $region48: #{tpu_custom_call.1} parent=1 // pred_region
      _
    $region49: #{tpu_custom_call.1} parent=1 // pred_fallthru
      _
    // Predicated region
    $region50: #{tpu_custom_call.1} parent=1 // pred_check
      _
    $region51: #{tpu_custom_call.1} parent=1 // pred_check_branch
      %177 = sbr.rel (0) target = $region53
    $region52: #{tpu_custom_call.1} parent=1 // pred_region
      %178 = dma.done [#allocation4], 128
    $region53: #{tpu_custom_call.1} parent=1 // pred_fallthru
      _
    %179 = vsyncpa [#allocation4], 1

</llo_original>
